<compile_context>
chip_gen: v7x
topology: tpu7x:2x2x1
jax: 0.10.0
libtpu: 0.0.40
codegen_flags: <defaults>
</compile_context>

<pallas_src>
import functools

import jax
import jax.numpy as jnp
from jax.experimental import pallas as pl
from jax.experimental.pallas import tpu as pltpu

BN_EPS = 1e-5


def _round_up(v, m):
    return (v + m - 1) // m * m


# ----------------------------------------------------------------------------
# Fused Pallas kernel:  feat = act(x @ W1 + b1) ; logits = feat @ W2 + b2
# ----------------------------------------------------------------------------
def class_block_kernel(x_ref, w1_ref, b1_ref, w2_ref, b2_ref,
                       logits_ref, feat_ref, *, leaky_slope, apply_act):
    # First linear (+ folded BatchNorm affine) — MXU matmul, f32 accumulation.
    h = jnp.dot(x_ref[...], w1_ref[...], preferred_element_type=jnp.float32)
    h = h + b1_ref[...]
    if apply_act:
        h = jnp.where(h > 0.0, h, leaky_slope * h)      # LeakyReLU(0.1)
    feat_ref[...] = h.astype(feat_ref.dtype)

    # Classifier linear on the VMEM-resident features (no HBM round-trip).
    logits = jnp.dot(h.astype(w2_ref.dtype), w2_ref[...],
                     preferred_element_type=jnp.float32)
    logits_ref[...] = (logits + b2_ref[...]).astype(logits_ref.dtype)


# ----------------------------------------------------------------------------
# Wrapper
# ----------------------------------------------------------------------------
def class_block_forward(x, params, *, relu=False, bnorm=True, test=False,
                        leaky_slope=0.1, compute_dtype=jnp.bfloat16,
                        max_tile_m=512):
    """x: (N, input_dim) float32. Returns [logits, feat] (or feat if test)."""
    n, d_in = x.shape
    # Weights stored as (in, out) == PyTorch weight.T. If importing from
    # PyTorch (out, in), transpose before use.
    w1 = params["w1"]                       # (input_dim, linear)
    b1 = params["b1"]                       # (linear,)
    w2 = params["w2"]                       # (linear, class_num)
    b2 = params["b2"]                       # (class_num,)
    hidden = w1.shape[1]
    n_cls = w2.shape[1]

    # ---- Fold BatchNorm1d (eval: running stats) into the first linear. ----
    if bnorm:
        scale = params["bn_gamma"] / jnp.sqrt(params["bn_var"] + BN_EPS)
        w1 = w1 * scale[None, :]
        b1 = (b1 - params["bn_mean"]) * scale + params["bn_beta"]

    # ---- Lane-dense padding (multiples of 128) + bounded M tiling. ----
    dp = _round_up(d_in, 128)
    hp = _round_up(hidden, 128)
    cp = _round_up(n_cls, 128)
    tm = min(max_tile_m, _round_up(n, 8))
    mp = _round_up(n, tm)

    x_p = jnp.zeros((mp, dp), compute_dtype).at[:n, :d_in].set(
        x.astype(compute_dtype))
    w1_p = jnp.zeros((dp, hp), compute_dtype).at[:d_in, :hidden].set(
        w1.astype(compute_dtype))
    b1_p = jnp.zeros((1, hp), jnp.float32).at[0, :hidden].set(
        b1.astype(jnp.float32))
    w2_p = jnp.zeros((hp, cp), compute_dtype).at[:hidden, :n_cls].set(
        w2.astype(compute_dtype))
    b2_p = jnp.zeros((1, cp), jnp.float32).at[0, :n_cls].set(
        b2.astype(jnp.float32))

    grid = (mp // tm,)
    itemsize = jnp.dtype(compute_dtype).itemsize
    flops = 2 * mp * (dp * hp + hp * cp)
    bytes_accessed = (mp * dp * itemsize            # x
                      + dp * hp * itemsize          # w1
                      + hp * cp * itemsize          # w2
                      + (hp + cp) * 4               # biases
                      + mp * (hp + cp) * 4)         # feat + logits out

    logits_p, feat_p = pl.pallas_call(
        functools.partial(class_block_kernel,
                          leaky_slope=leaky_slope, apply_act=relu),
        out_shape=(jax.ShapeDtypeStruct((mp, cp), jnp.float32),
                   jax.ShapeDtypeStruct((mp, hp), jnp.float32)),
        grid_spec=pltpu.PrefetchScalarGridSpec(
            num_scalar_prefetch=0,
            grid=grid,
            in_specs=[
                pl.BlockSpec((tm, dp), lambda i: (i, 0)),   # x tile
                pl.BlockSpec((dp, hp), lambda i: (0, 0)),   # W1 (resident)
                pl.BlockSpec((1, hp), lambda i: (0, 0)),    # folded bias 1
                pl.BlockSpec((hp, cp), lambda i: (0, 0)),   # W2 (resident)
                pl.BlockSpec((1, cp), lambda i: (0, 0)),    # bias 2
            ],
            out_specs=(
                pl.BlockSpec((tm, cp), lambda i: (i, 0)),   # logits
                pl.BlockSpec((tm, hp), lambda i: (i, 0)),   # features
            ),
        ),
        compiler_params=pltpu.CompilerParams(
            dimension_semantics=("parallel",)),
        cost_estimate=pl.CostEstimate(flops=flops, transcendentals=0,
                                      bytes_accessed=bytes_accessed),
    )(x_p, w1_p, b1_p, w2_p, b2_p)

    feat = feat_p[:n, :hidden]
    if test:
        return feat
    logits = logits_p[:n, :n_cls]
    return [logits, feat]


# ----------------------------------------------------------------------------
# Parameter construction (deterministic, synthetic; mirrors the PyTorch inits)
# ----------------------------------------------------------------------------
def init_params(key, input_dim, linear, class_num):
    k1, k2, k3, k4 = jax.random.split(key, 4)
    # kaiming_normal fan_out (Linear in add_block)
    w1 = jax.random.normal(k1, (input_dim, linear), jnp.float32) * jnp.sqrt(
        2.0 / linear)
    b1 = jnp.zeros((linear,), jnp.float32)
    # BatchNorm1d: weight ~ N(1, 0.02), bias 0; synthetic running stats.
    bn_gamma = 1.0 + 0.02 * jax.random.normal(k2, (linear,), jnp.float32)
    bn_beta = jnp.zeros((linear,), jnp.float32)
    bn_mean = 0.01 * jax.random.normal(k3, (linear,), jnp.float32)
    bn_var = jnp.ones((linear,), jnp.float32)
    # classifier Linear: weight ~ N(0, 0.001), bias 0.
    w2 = 0.001 * jax.random.normal(k4, (linear, class_num), jnp.float32)
    b2 = jnp.zeros((class_num,), jnp.float32)
    return dict(w1=w1, b1=b1, bn_gamma=bn_gamma, bn_beta=bn_beta,
                bn_mean=bn_mean, bn_var=bn_var, w2=w2, b2=b2)


# ----------------------------------------------------------------------------
if __name__ == "__main__":
    key = jax.random.PRNGKey(0)
    pkey, xkey = jax.random.split(key)

    # Small shapes: ClassBlock(input_dim=64, class_num=10, droprate=0.5,
    #                          relu=True, bnorm=True, linear=128, test=False)
    batch, input_dim, linear, class_num = 4, 64, 128, 10
    params = init_params(pkey, input_dim, linear, class_num)
    x = jax.random.normal(xkey, (batch, input_dim), jnp.float32)

    logits, feat = class_block_forward(x, params, relu=True, bnorm=True,
                                       test=False)
    logits, feat = jax.block_until_ready((logits, feat))

    assert logits.shape == (batch, class_num), logits.shape
    assert feat.shape == (batch, linear), feat.shape
    assert logits.dtype == jnp.float32 and feat.dtype == jnp.float32

    # Plain-JAX reference (eval-mode BN, LeakyReLU, dropout = identity).
    scale = params["bn_gamma"] / jnp.sqrt(params["bn_var"] + BN_EPS)
    h_ref = (x @ params["w1"] + params["b1"] - params["bn_mean"]) * scale \
        + params["bn_beta"]
    h_ref = jnp.where(h_ref > 0, h_ref, 0.1 * h_ref)
    logits_ref = h_ref @ params["w2"] + params["b2"]
    assert jnp.allclose(feat, h_ref, atol=3e-2, rtol=3e-2)
    assert jnp.allclose(logits, logits_ref, atol=3e-2, rtol=3e-2)

    print("KERNEL_OK")
</pallas_src>

<mosaic_0001>
module attributes {stable_mosaic.version = 11 : i64} {
  func.func @class_block_kernel(%arg0: i32, %arg1: memref<8x128xbf16, #tpu.memory_space<vmem>>, %arg2: memref<128x128xbf16, #tpu.memory_space<vmem>>, %arg3: memref<1x128xf32, #tpu.memory_space<vmem>>, %arg4: memref<128x128xbf16, #tpu.memory_space<vmem>>, %arg5: memref<1x128xf32, #tpu.memory_space<vmem>>, %arg6: memref<8x128xf32, #tpu.memory_space<vmem>>, %arg7: memref<8x128xf32, #tpu.memory_space<vmem>>) attributes {dimension_semantics = [#tpu.dimension_semantics<parallel>], iteration_bounds = array<i64: 1>, scalar_prefetch = 0 : i64, scratch_operands = 0 : i64, tpu.core_type = #tpu.core_type<tc>, window_params = [{transform_indices = @transform_0, window_bounds = array<i64: 8, 128>}, {pipeline_mode = #tpu.pipeline_mode<synchronous>, transform_indices = @transform_1, window_bounds = array<i64: 128, 128>}, {pipeline_mode = #tpu.pipeline_mode<synchronous>, transform_indices = @transform_2, window_bounds = array<i64: 1, 128>}, {pipeline_mode = #tpu.pipeline_mode<synchronous>, transform_indices = @transform_3, window_bounds = array<i64: 128, 128>}, {pipeline_mode = #tpu.pipeline_mode<synchronous>, transform_indices = @transform_4, window_bounds = array<i64: 1, 128>}, {transform_indices = @transform_5, window_bounds = array<i64: 8, 128>}, {transform_indices = @transform_6, window_bounds = array<i64: 8, 128>}]} {
    %c0 = arith.constant 0 : index
    %c0_0 = arith.constant 0 : index
    %0 = vector.load %arg1[%c0, %c0_0] : memref<8x128xbf16, #tpu.memory_space<vmem>>, vector<8x128xbf16>
    %c0_1 = arith.constant 0 : index
    %c0_2 = arith.constant 0 : index
    %1 = vector.load %arg2[%c0_1, %c0_2] : memref<128x128xbf16, #tpu.memory_space<vmem>>, vector<128x128xbf16>
    %cst = arith.constant dense<0.000000e+00> : vector<8x128xf32>
    %2 = tpu.matmul %0, %1, %cst {dimension_numbers = #tpu.dot_dimension_numbers<[1], [0], [0], [1], [0, 0, 1, 1], [], []>} : vector<8x128xbf16>, vector<128x128xbf16>, vector<8x128xf32> -> vector<8x128xf32>
    %c0_3 = arith.constant 0 : index
    %c0_4 = arith.constant 0 : index
    %3 = vector.load %arg3[%c0_3, %c0_4] : memref<1x128xf32, #tpu.memory_space<vmem>>, vector<1x128xf32>
    %4 = vector.broadcast %3 : vector<1x128xf32> to vector<8x128xf32>
    %5 = arith.addf %2, %4 : vector<8x128xf32>
    %cst_5 = arith.constant 0.000000e+00 : f32
    %6 = vector.broadcast %cst_5 : f32 to vector<8x128xf32>
    %7 = arith.cmpf ogt, %5, %6 : vector<8x128xf32>
    %cst_6 = arith.constant 1.000000e-01 : f32
    %8 = vector.broadcast %cst_6 : f32 to vector<8x128xf32>
    %9 = arith.mulf %8, %5 : vector<8x128xf32>
    %10 = arith.select %7, %5, %9 : vector<8x128xi1>, vector<8x128xf32>
    %c0_7 = arith.constant 0 : index
    %c0_8 = arith.constant 0 : index
    %11 = vector.load %arg7[%c0_7, %c0_8] : memref<8x128xf32, #tpu.memory_space<vmem>>, vector<8x128xf32>
    tpu.vector_store %arg7[%c0_7, %c0_8], %10 {strides = array<i32>} : memref<8x128xf32, #tpu.memory_space<vmem>>, vector<8x128xf32>,
    %12 = arith.truncf %10 : vector<8x128xf32> to vector<8x128xbf16>
    %c0_9 = arith.constant 0 : index
    %c0_10 = arith.constant 0 : index
    %13 = vector.load %arg4[%c0_9, %c0_10] : memref<128x128xbf16, #tpu.memory_space<vmem>>, vector<128x128xbf16>
    %cst_11 = arith.constant dense<0.000000e+00> : vector<8x128xf32>
    %14 = tpu.matmul %12, %13, %cst_11 {dimension_numbers = #tpu.dot_dimension_numbers<[1], [0], [0], [1], [0, 0, 1, 1], [], []>} : vector<8x128xbf16>, vector<128x128xbf16>, vector<8x128xf32> -> vector<8x128xf32>
    %c0_12 = arith.constant 0 : index
    %c0_13 = arith.constant 0 : index
    %15 = vector.load %arg5[%c0_12, %c0_13] : memref<1x128xf32, #tpu.memory_space<vmem>>, vector<1x128xf32>
    %16 = vector.broadcast %15 : vector<1x128xf32> to vector<8x128xf32>
    %17 = arith.addf %14, %16 : vector<8x128xf32>
    %c0_14 = arith.constant 0 : index
    %c0_15 = arith.constant 0 : index
    %18 = vector.load %arg6[%c0_14, %c0_15] : memref<8x128xf32, #tpu.memory_space<vmem>>, vector<8x128xf32>
    tpu.vector_store %arg6[%c0_14, %c0_15], %17 {strides = array<i32>} : memref<8x128xf32, #tpu.memory_space<vmem>>, vector<8x128xf32>,
    return
  }
  func.func @transform_0(%arg0: i32) -> (i32, i32) {
    %c0_i32 = arith.constant 0 : i32
    %c0_i32_0 = arith.constant 0 : i32
    return %arg0, %c0_i32 : i32, i32
  }
  func.func @transform_1(%arg0: i32) -> (i32, i32) {
    %c0_i32 = arith.constant 0 : i32
    %c0_i32_0 = arith.constant 0 : i32
    %c0_i32_1 = arith.constant 0 : i32
    return %c0_i32, %c0_i32_0 : i32, i32
  }
  func.func @transform_2(%arg0: i32) -> (i32, i32) {
    %c0_i32 = arith.constant 0 : i32
    %c0_i32_0 = arith.constant 0 : i32
    %c0_i32_1 = arith.constant 0 : i32
    return %c0_i32, %c0_i32_0 : i32, i32
  }
  func.func @transform_3(%arg0: i32) -> (i32, i32) {
    %c0_i32 = arith.constant 0 : i32
    %c0_i32_0 = arith.constant 0 : i32
    %c0_i32_1 = arith.constant 0 : i32
    return %c0_i32, %c0_i32_0 : i32, i32
  }
  func.func @transform_4(%arg0: i32) -> (i32, i32) {
    %c0_i32 = arith.constant 0 : i32
    %c0_i32_0 = arith.constant 0 : i32
    %c0_i32_1 = arith.constant 0 : i32
    return %c0_i32, %c0_i32_0 : i32, i32
  }
  func.func @transform_5(%arg0: i32) -> (i32, i32) {
    %c0_i32 = arith.constant 0 : i32
    %c0_i32_0 = arith.constant 0 : i32
    return %arg0, %c0_i32 : i32, i32
  }
  func.func @transform_6(%arg0: i32) -> (i32, i32) {
    %c0_i32 = arith.constant 0 : i32
    %c0_i32_0 = arith.constant 0 : i32
    return %arg0, %c0_i32 : i32, i32
  }
}

</mosaic_0001>

<llo_original>
// kernel: tpu_custom_call.1
$region0: #{tpu_custom_call.1}
  #allocation0 [shape = 'u32[]', space=smem, size = 0x4, offset = 0x4, fixed_abs, tag = 'smem constant byte address 0x4 - core index']
  #allocation1 [shape = 'u32[144,128]{1,0:T(1,128)}', space=vmem, size = 0x12000, scoped, tag = 'internal scratch']
  %s0 = inlined_call_operand.hbm [shape: bf16[8,128], index: 0, kind: input, shape index: {}]
  %s1 = inlined_call_operand.hbm [shape: bf16[128,128], index: 1, kind: input, shape index: {}]
  %s2 = inlined_call_operand.vmem [shape: f32[1,128], index: 2, kind: input, shape index: {}]
  %s3 = inlined_call_operand.hbm [shape: bf16[128,128], index: 3, kind: input, shape index: {}]
  %s4 = inlined_call_operand.vmem [shape: f32[1,128], index: 4, kind: input, shape index: {}]
  %s5 = inlined_call_operand.hbm [shape: f32[8,128], index: 5, kind: output, shape index: {0}]
  %s6 = inlined_call_operand.hbm [shape: f32[8,128], index: 6, kind: output, shape index: {1}]
  %7 = xla_tuple %s5, %s6
  %s8 = sld [smem:[#allocation0]]
  $region50: #{tpu_custom_call.1} parent=0
    _
  %s10 = ssub.s32 1, %s8
  %s11 = scalar_select 0, %s10, %s8
  $region1: #{tpu_custom_call.1} parent=0
    #allocation2 [shape = 'u8[2048]{0}', space=vmem, size = 0x800, scoped, tag = 'input window, operand 0, single buffered']
    #allocation3 [shape = 's32[1]{0}', space=sflag, size = 0x4, scoped, tag = 'scoped memory for tpu_custom_call.1']
    #allocation4 [shape = 's32[1]{0}', space=sflag, size = 0x4, scoped, tag = 'scoped memory for tpu_custom_call.1']
    #allocation5 [shape = 'u8[32768]{0}', space=vmem, size = 0x8000, scoped, tag = 'input window, operand 1, single buffered']
    #allocation6 [shape = 's32[1]{0}', space=sflag, size = 0x4, scoped, tag = 'scoped memory for tpu_custom_call.1']
    #allocation7 [shape = 'u8[32768]{0}', space=vmem, size = 0x8000, scoped, tag = 'input window, operand 3, single buffered']
    #allocation8 [shape = 'u8[4096]{0}', space=vmem, size = 0x1000, scoped, tag = 'output window, operand 0, single buffered']
    #allocation9 [shape = 'u8[4096]{0}', space=vmem, size = 0x1000, scoped, tag = 'output window, operand 1, single buffered']
    #allocation10 [shape = 's32[1]{0}', space=sflag, size = 0x4, scoped, tag = 'scoped memory for tpu_custom_call.1']
    %12 = vsyncpa [#allocation3], 0
    %13 = vsyncpa [#allocation6], 0
    %14 = vsyncpa [#allocation4], 0
    %15 = vsyncpa [#allocation10], 0
    // Predicated region
    $region2: #{tpu_custom_call.1} parent=1 // pred_check
      _
    $region3: #{tpu_custom_call.1} parent=1 // pred_check_branch
      %17 = sbr.rel (0) target = $region5
    $region4: #{tpu_custom_call.1} parent=1 // pred_region
      %s19 = ssub.s32 64, 64
      %20 = vsyncadd [#allocation3], %s19
      %s22 = sshll.u32 [#allocation2], 4
      %s23 = int_to_ptr.vmem [resolvable:$true] %s22
      %25 = dma.hbm_to_vmem [thread:$0]  %s0, 64, %s23, [#allocation3]
    $region5: #{tpu_custom_call.1} parent=1 // pred_fallthru
      _
    // Predicated region
    $region6: #{tpu_custom_call.1} parent=1 // pred_check
      _
    $region7: #{tpu_custom_call.1} parent=1 // pred_check_branch
      %27 = sbr.rel (0) target = $region9
    $region8: #{tpu_custom_call.1} parent=1 // pred_region
      %s29 = ssub.s32 1024, 1024
      %30 = vsyncadd [#allocation6], %s29
      %s31 = sshll.u32 [#allocation5], 4
      %s32 = int_to_ptr.vmem [resolvable:$true] %s31
      %37 = dma.hbm_to_vmem [thread:$0]  %s1, 1024, %s32, [#allocation6], 64, 64, 4
    $region9: #{tpu_custom_call.1} parent=1 // pred_fallthru
      _
    // Predicated region
    $region10: #{tpu_custom_call.1} parent=1 // pred_check
      _
    $region11: #{tpu_custom_call.1} parent=1 // pred_check_branch
      %39 = sbr.rel (0) target = $region13
    $region12: #{tpu_custom_call.1} parent=1 // pred_region
      _
    $region13: #{tpu_custom_call.1} parent=1 // pred_fallthru
      _
    // Predicated region
    $region14: #{tpu_custom_call.1} parent=1 // pred_check
      _
    $region15: #{tpu_custom_call.1} parent=1 // pred_check_branch
      %41 = sbr.rel (0) target = $region17
    $region16: #{tpu_custom_call.1} parent=1 // pred_region
      %s43 = ssub.s32 1024, 1024
      %44 = vsyncadd [#allocation6], %s43
      %s45 = sshll.u32 [#allocation7], 4
      %s46 = int_to_ptr.vmem [resolvable:$true] %s45
      %51 = dma.hbm_to_vmem [thread:$0]  %s3, 1024, %s46, [#allocation6], 64, 64, 4
    $region17: #{tpu_custom_call.1} parent=1 // pred_fallthru
      _
    // Predicated region
    $region18: #{tpu_custom_call.1} parent=1 // pred_check
      _
    $region19: #{tpu_custom_call.1} parent=1 // pred_check_branch
      %53 = sbr.rel (0) target = $region21
    $region20: #{tpu_custom_call.1} parent=1 // pred_region
      _
    $region21: #{tpu_custom_call.1} parent=1 // pred_fallthru
      _
    // Predicated region
    $region22: #{tpu_custom_call.1} parent=1 // pred_check
      _
    $region23: #{tpu_custom_call.1} parent=1 // pred_check_branch
      %55 = sbr.rel (0) target = $region25
    $region24: #{tpu_custom_call.1} parent=1 // pred_region
      %56 = dma.done [#allocation3], 64
    $region25: #{tpu_custom_call.1} parent=1 // pred_fallthru
      _
    // Predicated region
    $region26: #{tpu_custom_call.1} parent=1 // pred_check
      _
    $region27: #{tpu_custom_call.1} parent=1 // pred_check_branch
      %58 = sbr.rel (0) target = $region29
    $region28: #{tpu_custom_call.1} parent=1 // pred_region
      %59 = dma.done [#allocation6], 1024
    $region29: #{tpu_custom_call.1} parent=1 // pred_fallthru
      _
    // Predicated region
    $region30: #{tpu_custom_call.1} parent=1 // pred_check
      _
    $region31: #{tpu_custom_call.1} parent=1 // pred_check_branch
      %61 = sbr.rel (0) target = $region33
    $region32: #{tpu_custom_call.1} parent=1 // pred_region
      %62 = dma.done [#allocation6], 1024
    $region33: #{tpu_custom_call.1} parent=1 // pred_fallthru
      _
    %v64 = vld [vmem:[#allocation2] sm:$0xf]
    %v65 = vld [vmem:[#allocation5] sm:$0xf]
    %v66 = vld [vmem:[#allocation5 + $0x4] sm:$0xf]
    %v67 = vld [vmem:[#allocation5 + $0x8] sm:$0xf]
    %v68 = vld [vmem:[#allocation5 + $0xc] sm:$0xf]
    %v69 = vld [vmem:[#allocation5 + $0x10] sm:$0xf]
    %v70 = vld [vmem:[#allocation5 + $0x14] sm:$0xf]
    %v71 = vld [vmem:[#allocation5 + $0x18] sm:$0xf]
    %v72 = vld [vmem:[#allocation5 + $0x1c] sm:$0xf]
    %v73 = vld [vmem:[#allocation5 + $0x20] sm:$0xf]
    %v74 = vld [vmem:[#allocation5 + $0x24] sm:$0xf]
    %v75 = vld [vmem:[#allocation5 + $0x28] sm:$0xf]
    %v76 = vld [vmem:[#allocation5 + $0x2c] sm:$0xf]
    %v77 = vld [vmem:[#allocation5 + $0x30] sm:$0xf]
    %v78 = vld [vmem:[#allocation5 + $0x34] sm:$0xf]
    %v79 = vld [vmem:[#allocation5 + $0x38] sm:$0xf]
    %v80 = vld [vmem:[#allocation5 + $0x3c] sm:$0xf]
    %v81 = vld [vmem:[%s2] sm:$0x1]
    %v83 = vlaneseq
    %v84 = vshrl.u32 %v83, 7
    %v85 = vsub.s32 0, %v84
    %v86 = vrot.slane %v81, %v85
    %v104 = vunpack.c.l.b16 %v65
    %v105 = vunpack.c.l.b16 %v66
    %v106 = vunpack.c.l.b16 %v67
    %v107 = vunpack.c.l.b16 %v68
    %v108 = vunpack.c.l.b16 %v69
    %v109 = vunpack.c.l.b16 %v70
    %v110 = vunpack.c.l.b16 %v71
    %v111 = vunpack.c.l.b16 %v72
    %v112 = vunpack.c.l.b16 %v73
    %v113 = vunpack.c.l.b16 %v74
    %v114 = vunpack.c.l.b16 %v75
    %v115 = vunpack.c.l.b16 %v76
    %v116 = vunpack.c.l.b16 %v77
    %v117 = vunpack.c.l.b16 %v78
    %v118 = vunpack.c.l.b16 %v79
    %v119 = vunpack.c.l.b16 %v80
    %v120 = vpack.c.b16 %v105, %v104
    %v121 = vpack.c.b16 %v107, %v106
    %v122 = vpack.c.b16 %v109, %v108
    %v123 = vpack.c.b16 %v111, %v110
    %v124 = vpack.c.b16 %v113, %v112
    %v125 = vpack.c.b16 %v115, %v114
    %v126 = vpack.c.b16 %v117, %v116
    %v127 = vpack.c.b16 %v119, %v118
    %136 = vmatprep.subr.bf16.mxu0 0
    %137 = vmatpush1.bf16.msra.mxu0 %v120
    %138 = vmatprep.subr.bf16.mxu0 0
    %139 = vmatpush1.bf16.msra.mxu0 %v121
    %140 = vmatprep.subr.bf16.mxu0 0
    %141 = vmatpush1.bf16.msra.mxu0 %v122
    %142 = vmatprep.subr.bf16.mxu0 0
    %143 = vmatpush1.bf16.msra.mxu0 %v123
    %144 = vmatprep.subr.bf16.mxu0 0
    %145 = vmatpush1.bf16.msra.mxu0 %v124
    %146 = vmatprep.subr.bf16.mxu0 0
    %147 = vmatpush1.bf16.msra.mxu0 %v125
    %148 = vmatprep.subr.bf16.mxu0 0
    %149 = vmatpush1.bf16.msra.mxu0 %v126
    %150 = vmatprep.subr.bf16.mxu0 0
    %151 = vmatpush1.bf16.msra.mxu0 %v127
    %152 = vmatprep.subr.bf16.mxu0 0
    %153 = vmatpush1.bf16.msra.mxu0 0
    %154 = vmatprep.subr.bf16.mxu0 0
    %155 = vmatpush1.bf16.msra.mxu0 0
    %156 = vmatprep.subr.bf16.mxu0 0
    %157 = vmatpush1.bf16.msra.mxu0 0
    %158 = vmatprep.subr.bf16.mxu0 0
    %159 = vmatpush1.bf16.msra.mxu0 0
    %160 = vmatprep.subr.bf16.mxu0 0
    %161 = vmatpush1.bf16.msra.mxu0 0
    %162 = vmatprep.subr.bf16.mxu0 0
    %163 = vmatpush1.bf16.msra.mxu0 0
    %164 = vmatprep.subr.bf16.mxu0 0
    %165 = vmatpush1.bf16.msra.mxu0 0
    %166 = vmatprep.subr.bf16.mxu0 0
    %167 = vmatpush1.bf16.msra.mxu0 0
    %168 = vmatprep.mubr.bf16.mxu0 0
    %169 = vmatmul.mubr.bf16.gmra.mrb[0].mxu0 %v64
    %v170 = vpop.f32.mrb[0].mxu0
    %v171 = vadd.f32 %v86, %v170
    %v172 = vpop.f32.mrb[0].mxu0
    %v173 = vpop.f32.mrb[0].mxu0
    %v174 = vpop.f32.mrb[0].mxu0
    %175 = vdwg.mxu0
    %vm176 = vcmp.gt.f32.partialorder %v171, 0.0
    %v177 = vmul.f32 %v171, 0.1
    %v178 = vsel %vm176, %v171, %v177
    %179 = vst [vmem:[#allocation9] sm:$0xff] %v178
    %v180 = vpack.c.bf16 %v178, %v178
    %v181 = vld [vmem:[#allocation7] sm:$0xf]
    %v182 = vld [vmem:[#allocation7 + $0x4] sm:$0xf]
    %v183 = vld [vmem:[#allocation7 + $0x8] sm:$0xf]
    %v184 = vld [vmem:[#allocation7 + $0xc] sm:$0xf]
    %v185 = vld [vmem:[#allocation7 + $0x10] sm:$0xf]
    %v186 = vld [vmem:[#allocation7 + $0x14] sm:$0xf]
    %v187 = vld [vmem:[#allocation7 + $0x18] sm:$0xf]
    %v188 = vld [vmem:[#allocation7 + $0x1c] sm:$0xf]
    %v189 = vld [vmem:[#allocation7 + $0x20] sm:$0xf]
    %v190 = vld [vmem:[#allocation7 + $0x24] sm:$0xf]
    %v191 = vld [vmem:[#allocation7 + $0x28] sm:$0xf]
    %v192 = vld [vmem:[#allocation7 + $0x2c] sm:$0xf]
    %v193 = vld [vmem:[#allocation7 + $0x30] sm:$0xf]
    %v194 = vld [vmem:[#allocation7 + $0x34] sm:$0xf]
    %v195 = vld [vmem:[#allocation7 + $0x38] sm:$0xf]
    %v196 = vld [vmem:[#allocation7 + $0x3c] sm:$0xf]
    %v197 = vld [vmem:[%s4] sm:$0x1]
    %v199 = vlaneseq
    %v200 = vshrl.u32 %v199, 7
    %v201 = vsub.s32 0, %v200
    %v202 = vrot.slane %v197, %v201
    %v220 = vunpack.c.l.b16 %v181
    %v221 = vunpack.c.l.b16 %v182
    %v222 = vunpack.c.l.b16 %v183
    %v223 = vunpack.c.l.b16 %v184
    %v224 = vunpack.c.l.b16 %v185
    %v225 = vunpack.c.l.b16 %v186
    %v226 = vunpack.c.l.b16 %v187
    %v227 = vunpack.c.l.b16 %v188
    %v228 = vunpack.c.l.b16 %v189
    %v229 = vunpack.c.l.b16 %v190
    %v230 = vunpack.c.l.b16 %v191
    %v231 = vunpack.c.l.b16 %v192
    %v232 = vunpack.c.l.b16 %v193
    %v233 = vunpack.c.l.b16 %v194
    %v234 = vunpack.c.l.b16 %v195
    %v235 = vunpack.c.l.b16 %v196
    %v236 = vpack.c.b16 %v221, %v220
    %v237 = vpack.c.b16 %v223, %v222
    %v238 = vpack.c.b16 %v225, %v224
    %v239 = vpack.c.b16 %v227, %v226
    %v240 = vpack.c.b16 %v229, %v228
    %v241 = vpack.c.b16 %v231, %v230
    %v242 = vpack.c.b16 %v233, %v232
    %v243 = vpack.c.b16 %v235, %v234
    %252 = vmatprep.subr.bf16.mxu0 0
    %253 = vmatpush1.bf16.msra.mxu0 %v236
    %254 = vmatprep.subr.bf16.mxu0 0
    %255 = vmatpush1.bf16.msra.mxu0 %v237
    %256 = vmatprep.subr.bf16.mxu0 0
    %257 = vmatpush1.bf16.msra.mxu0 %v238
    %258 = vmatprep.subr.bf16.mxu0 0
    %259 = vmatpush1.bf16.msra.mxu0 %v239
    %260 = vmatprep.subr.bf16.mxu0 0
    %261 = vmatpush1.bf16.msra.mxu0 %v240
    %262 = vmatprep.subr.bf16.mxu0 0
    %263 = vmatpush1.bf16.msra.mxu0 %v241
    %264 = vmatprep.subr.bf16.mxu0 0
    %265 = vmatpush1.bf16.msra.mxu0 %v242
    %266 = vmatprep.subr.bf16.mxu0 0
    %267 = vmatpush1.bf16.msra.mxu0 %v243
    %268 = vmatprep.subr.bf16.mxu0 0
    %269 = vmatpush1.bf16.msra.mxu0 0
    %270 = vmatprep.subr.bf16.mxu0 0
    %271 = vmatpush1.bf16.msra.mxu0 0
    %272 = vmatprep.subr.bf16.mxu0 0
    %273 = vmatpush1.bf16.msra.mxu0 0
    %274 = vmatprep.subr.bf16.mxu0 0
    %275 = vmatpush1.bf16.msra.mxu0 0
    %276 = vmatprep.subr.bf16.mxu0 0
    %277 = vmatpush1.bf16.msra.mxu0 0
    %278 = vmatprep.subr.bf16.mxu0 0
    %279 = vmatpush1.bf16.msra.mxu0 0
    %280 = vmatprep.subr.bf16.mxu0 0
    %281 = vmatpush1.bf16.msra.mxu0 0
    %282 = vmatprep.subr.bf16.mxu0 0
    %283 = vmatpush1.bf16.msra.mxu0 0
    %284 = vmatprep.mubr.bf16.mxu0 0
    %285 = vmatmul.mubr.bf16.gmra.mrb[0].mxu0 %v180
    %v286 = vpop.f32.mrb[0].mxu0
    %v287 = vadd.f32 %v202, %v286
    %v288 = vpop.f32.mrb[0].mxu0
    %v289 = vpop.f32.mrb[0].mxu0
    %v290 = vpop.f32.mrb[0].mxu0
    %291 = vdwg.mxu0
    %292 = vst [vmem:[#allocation8] sm:$0xff] %v287
    // Predicated region
    $region34: #{tpu_custom_call.1} parent=1 // pred_check
      _
    $region35: #{tpu_custom_call.1} parent=1 // pred_check_branch
      %294 = sbr.rel (0) target = $region37
    $region36: #{tpu_custom_call.1} parent=1 // pred_region
      %s296 = ssub.s32 128, 128
      %297 = vsyncadd [#allocation4], %s296
      %s299 = sshll.u32 [#allocation8], 4
      %s300 = int_to_ptr.vmem [resolvable:$true] %s299
      %302 = dma.vmem_to_hbm [thread:$0]  %s300, 128, %s5, [#allocation4]
    $region37: #{tpu_custom_call.1} parent=1 // pred_fallthru
      _
    // Predicated region
    $region38: #{tpu_custom_call.1} parent=1 // pred_check
      _
    $region39: #{tpu_custom_call.1} parent=1 // pred_check_branch
      %304 = sbr.rel (0) target = $region41
    $region40: #{tpu_custom_call.1} parent=1 // pred_region
      %s306 = ssub.s32 128, 128
      %307 = vsyncadd [#allocation10], %s306
      %s309 = sshll.u32 [#allocation9], 4
      %s310 = int_to_ptr.vmem [resolvable:$true] %s309
      %312 = dma.vmem_to_hbm [thread:$0]  %s310, 128, %s6, [#allocation10]
    $region41: #{tpu_custom_call.1} parent=1 // pred_fallthru
      _
    // Predicated region
    $region42: #{tpu_custom_call.1} parent=1 // pred_check
      _
    $region43: #{tpu_custom_call.1} parent=1 // pred_check_branch
      %314 = sbr.rel (0) target = $region45
    $region44: #{tpu_custom_call.1} parent=1 // pred_region
      %315 = dma.done [#allocation4], 128
    $region45: #{tpu_custom_call.1} parent=1 // pred_fallthru
      _
    // Predicated region
    $region46: #{tpu_custom_call.1} parent=1 // pred_check
      _
    $region47: #{tpu_custom_call.1} parent=1 // pred_check_branch
      %317 = sbr.rel (0) target = $region49
    $region48: #{tpu_custom_call.1} parent=1 // pred_region
      %318 = dma.done [#allocation10], 128
    $region49: #{tpu_custom_call.1} parent=1 // pred_fallthru
      _
    %319 = vsyncpa [#allocation3], 1
    %320 = vsyncpa [#allocation6], 1
    %321 = vsyncpa [#allocation4], 1
    %322 = vsyncpa [#allocation10], 1

</llo_original>
